<compile_context>
chip_gen: v7x
topology: tpu7x:2x2x1
jax: 0.10.0
libtpu: 0.0.40
codegen_flags: <defaults>
</compile_context>

<pallas_src>
import functools

import jax
import jax.numpy as jnp
from jax.experimental import pallas as pl
from jax.experimental.pallas import tpu as pltpu


def _stats_kernel(t_ref, out_ref, *, n_tiles, valid_rows_last, mask_last):
    """Per-tile partials over y_true: sum|t|, sum t, sum t^2, max|t|."""
    i = pl.program_id(0)

    def body(t):
        t_abs = jnp.abs(t)
        grp = lambda x: x.reshape(-1, 8, 128)          # vreg-aligned, free
        out_ref[0, 0] = jnp.sum(grp(t_abs), axis=0)
        out_ref[0, 1] = jnp.sum(grp(t), axis=0)
        out_ref[0, 2] = jnp.sum(grp(t * t), axis=0)
        out_ref[0, 3] = jnp.max(grp(t_abs), axis=0)

    if mask_last:
        @pl.when(i < n_tiles - 1)
        def _full():
            body(t_ref[...].astype(jnp.float32))

        @pl.when(i == n_tiles - 1)
        def _tail():
            rows = jax.lax.broadcasted_iota(jnp.int32, t_ref.shape, 0)
            t = jnp.where(rows < valid_rows_last,
                          t_ref[...].astype(jnp.float32), 0.0)
            body(t)
    else:
        body(t_ref[...].astype(jnp.float32))


def _loss_kernel(thr_ref, p_ref, t_ref, out_ref, *, n_tiles, valid_rows_last,
                 mask_last, huber_delta, half_over_delta):
    """Per-tile partials of all fused loss sums (single load of each tile)."""
    i = pl.program_id(0)
    thr = thr_ref[0]

    def body(p, t):
        d = p - t
        sq = d * d
        ad = jnp.abs(d)
        hub = jnp.where(ad < huber_delta,
                        half_over_delta * sq,
                        ad - 0.5 * huber_delta)
        # strict '>' keeps zero pads / masked rows out (thr >= 0 always)
        pk = jnp.abs(t) > thr
        grp = lambda x: x.reshape(-1, 8, 128)
        out_ref[0, 0] = jnp.sum(grp(sq), axis=0)
        out_ref[0, 1] = jnp.sum(grp(ad), axis=0)
        out_ref[0, 2] = jnp.sum(grp(hub), axis=0)
        out_ref[0, 3] = jnp.sum(grp(jnp.where(pk, 1.0, 0.0)), axis=0)
        out_ref[0, 4] = jnp.sum(grp(jnp.where(pk, sq, 0.0)), axis=0)
        out_ref[0, 5] = jnp.sum(grp(jnp.where(pk, ad, 0.0)), axis=0)

    if mask_last:
        @pl.when(i < n_tiles - 1)
        def _full():
            body(p_ref[...].astype(jnp.float32), t_ref[...].astype(jnp.float32))

        @pl.when(i == n_tiles - 1)
        def _tail():
            rows = jax.lax.broadcasted_iota(jnp.int32, t_ref.shape, 0)
            m = rows < valid_rows_last
            body(jnp.where(m, p_ref[...].astype(jnp.float32), 0.0),
                 jnp.where(m, t_ref[...].astype(jnp.float32), 0.0))
    else:
        body(p_ref[...].astype(jnp.float32), t_ref[...].astype(jnp.float32))


def enhanced_balanced_loss(y_pred, y_true, *,
                           mse_weight=0.5, mae_weight=0.3, peak_weight=0.2,
                           huber_weight=0.2, r2_weight=0.1,
                           peak_threshold=0.7, huber_delta=0.1,
                           tile_rows=2048):
    assert y_pred.shape == y_true.shape
    n = int(y_true.size)
    lane = 128

    rows = -(-n // lane)                              # rows actually in HBM
    tile_rows = min(tile_rows, -(-rows // 16) * 16)
    tile_rows = max(16, -(-tile_rows // 16) * 16)     # f32- & bf16-safe sublanes
    n_tiles = -(-rows // tile_rows)
    mask_last = (n_tiles * tile_rows != rows)         # Pallas-padded garbage rows
    valid_rows_last = rows - (n_tiles - 1) * tile_rows

    def _prep(x):
        flat = x.reshape(-1)
        if rows * lane != n:
            # <=127-element tail pad; only triggers when n % 128 != 0.
            # TODO(synk): stream the tail fragment separately to avoid the copy.
            flat = jnp.pad(flat, (0, rows * lane - n))
        return flat.reshape(rows, lane)               # layout-preserving, no copy

    fp = _prep(y_pred)   # original dtype over the wire; upcast in-kernel
    ft = _prep(y_true)

    itemsize = max(jnp.dtype(fp.dtype).itemsize, jnp.dtype(ft.dtype).itemsize)
    # 2 inputs x 2 pipeline buffers x tile + partial-slab outputs + headroom;
    # well under v5e/v6e/v7x scoped-VMEM ceilings.
    vmem_bytes = int(4 * tile_rows * lane * itemsize + (8 << 20))
    cparams = pltpu.CompilerParams(dimension_semantics=("parallel",),
                                   vmem_limit_bytes=vmem_bytes)
    tile_spec = lambda: pl.BlockSpec((tile_rows, lane), lambda i: (i, 0))

    # ---- pass 1: y_true statistics (1N HBM read) -----------------------------
    stats = pl.pallas_call(
        functools.partial(_stats_kernel, n_tiles=n_tiles,
                          valid_rows_last=valid_rows_last, mask_last=mask_last),
        out_shape=jax.ShapeDtypeStruct((n_tiles, 4, 8, lane), jnp.float32),
        grid_spec=pltpu.PrefetchScalarGridSpec(
            num_scalar_prefetch=0, grid=(n_tiles,),
            in_specs=[tile_spec()],
            out_specs=pl.BlockSpec((1, 4, 8, lane), lambda i: (i, 0, 0, 0))),
        compiler_params=cparams,
    )(ft)

    nf = float(n)
    sums = jnp.sum(stats[:, :3], axis=(0, 2, 3))
    s_abs, s_t, s_t2 = sums[0], sums[1], sums[2]
    max_abs = jnp.max(stats[:, 3])

    mean_abs = s_abs / nf
    denom = float(max(n - 1, 1))          # torch.std ddof=1 (clamped at n==1)
    var_abs = jnp.maximum((s_t2 - nf * mean_abs * mean_abs) / denom, 0.0)
    thr = jnp.maximum(peak_threshold * max_abs,
                      mean_abs + 1.5 * jnp.sqrt(var_abs))

    # ---- pass 2: fused loss partial sums (2N HBM read) -----------------------
    parts = pl.pallas_call(
        functools.partial(_loss_kernel, n_tiles=n_tiles,
                          valid_rows_last=valid_rows_last, mask_last=mask_last,
                          huber_delta=huber_delta,
                          half_over_delta=0.5 / huber_delta),
        out_shape=jax.ShapeDtypeStruct((n_tiles, 6, 8, lane), jnp.float32),
        grid_spec=pltpu.PrefetchScalarGridSpec(
            num_scalar_prefetch=0, grid=(n_tiles,),
            in_specs=[pl.BlockSpec(memory_space=pltpu.SMEM),   # threshold scalar
                      tile_spec(), tile_spec()],
            out_specs=pl.BlockSpec((1, 6, 8, lane), lambda i: (i, 0, 0, 0))),
        compiler_params=cparams,
    )(jnp.reshape(thr, (1,)).astype(jnp.float32), fp, ft)

    psums = jnp.sum(parts, axis=(0, 2, 3))
    s_sq, s_ad, s_hub, p_cnt, p_sq, p_ad = (psums[k] for k in range(6))

    mse_loss = s_sq / nf
    mae_loss = s_ad / nf
    huber_loss = s_hub / nf
    peak_loss = jnp.where(p_cnt > 0.0,
                          (0.7 * p_sq + 0.3 * p_ad) / jnp.maximum(p_cnt, 1.0),
                          0.0)
    if n > 1:
        y_mean = s_t / nf
        ss_tot = s_t2 - nf * y_mean * y_mean
        r2_loss = jnp.where(ss_tot > 0.0, s_sq / ss_tot, 0.0)
    else:
        r2_loss = 0.0

    return (mse_weight * mse_loss + mae_weight * mae_loss
            + peak_weight * peak_loss + huber_weight * huber_loss
            + r2_weight * r2_loss)


def _reference_loss(y_pred, y_true,
                    mse_weight=0.5, mae_weight=0.3, peak_weight=0.2,
                    huber_weight=0.2, r2_weight=0.1,
                    peak_threshold=0.7, huber_delta=0.1):
    p = y_pred.astype(jnp.float32)
    t = y_true.astype(jnp.float32)
    d = p - t
    sq = d * d
    ad = jnp.abs(d)
    mse_loss = jnp.mean(sq)
    mae_loss = jnp.mean(ad)
    hub = jnp.where(ad < huber_delta, 0.5 * sq / huber_delta, ad - 0.5 * huber_delta)
    huber_loss = jnp.mean(hub)
    y_abs = jnp.abs(t)
    thr = jnp.maximum(peak_threshold * jnp.max(y_abs),
                      jnp.mean(y_abs) + 1.5 * jnp.std(y_abs, ddof=1))
    pm = (y_abs > thr).astype(jnp.float32)
    cnt = jnp.sum(pm)
    peak_loss = jnp.where(
        cnt > 0,
        0.7 * jnp.sum(sq * pm) / jnp.maximum(cnt, 1.0)
        + 0.3 * jnp.sum(ad * pm) / jnp.maximum(cnt, 1.0),
        0.0)
    ss_tot = jnp.sum((t - jnp.mean(t)) ** 2)
    r2_loss = jnp.where(ss_tot > 0, jnp.sum(sq) / ss_tot, 0.0)
    return (mse_weight * mse_loss + mae_weight * mae_loss + peak_weight * peak_loss
            + huber_weight * huber_loss + r2_weight * r2_loss)


if __name__ == "__main__":
    key = jax.random.PRNGKey(0)
    k1, k2 = jax.random.split(key)
    shape = (2, 4, 16, 16)  # small synthetic predictions / targets
    y_true = jax.random.normal(k1, shape, dtype=jnp.float32)
    y_pred = y_true + 0.1 * jax.random.normal(k2, shape, dtype=jnp.float32)

    loss = enhanced_balanced_loss(y_pred, y_true)
    loss = jax.block_until_ready(loss)

    ref = _reference_loss(y_pred, y_true)
    assert jnp.allclose(loss, ref, rtol=2e-5, atol=2e-6), (loss, ref)
    print("KERNEL_OK")
</pallas_src>

<mosaic_0001>
module attributes {stable_mosaic.version = 11 : i64} {
  func.func @_stats_kernel(%arg0: i32, %arg1: memref<16x128xf32, #tpu.memory_space<vmem>>, %arg2: memref<1x4x8x128xf32, #tpu.memory_space<vmem>>) attributes {dimension_semantics = [#tpu.dimension_semantics<parallel>], iteration_bounds = array<i64: 1>, scalar_prefetch = 0 : i64, scratch_operands = 0 : i64, tpu.core_type = #tpu.core_type<tc>, window_params = [{transform_indices = @transform_0, window_bounds = array<i64: 16, 128>}, {transform_indices = @transform_1, window_bounds = array<i64: 1, 4, 8, 128>}]} {
    %c0 = arith.constant 0 : index
    %c0_0 = arith.constant 0 : index
    %0 = vector.load %arg1[%c0, %c0_0] : memref<16x128xf32, #tpu.memory_space<vmem>>, vector<16x128xf32>
    %1 = math.absf %0 : vector<16x128xf32>
    %2 = vector.shape_cast %1 : vector<16x128xf32> to vector<2x8x128xf32>
    %cst = arith.constant dense<0.000000e+00> : vector<8x128xf32>
    %3 = vector.multi_reduction <add>, %2, %cst [0] : vector<2x8x128xf32> to vector<8x128xf32>
    %c0_1 = arith.constant 0 : index
    %c0_2 = arith.constant 0 : index
    %c0_3 = arith.constant 0 : index
    %c0_4 = arith.constant 0 : index
    %4 = vector.load %arg2[%c0_1, %c0_2, %c0_3, %c0_4] : memref<1x4x8x128xf32, #tpu.memory_space<vmem>>, vector<1x1x8x128xf32>
    %5 = vector.shape_cast %4 : vector<1x1x8x128xf32> to vector<8x128xf32>
    %6 = vector.shape_cast %3 : vector<8x128xf32> to vector<1x1x8x128xf32>
    tpu.vector_store %arg2[%c0_1, %c0_2, %c0_3, %c0_4], %6 {strides = array<i32>} : memref<1x4x8x128xf32, #tpu.memory_space<vmem>>, vector<1x1x8x128xf32>,
    %7 = vector.shape_cast %0 : vector<16x128xf32> to vector<2x8x128xf32>
    %cst_5 = arith.constant dense<0.000000e+00> : vector<8x128xf32>
    %8 = vector.multi_reduction <add>, %7, %cst_5 [0] : vector<2x8x128xf32> to vector<8x128xf32>
    %c0_6 = arith.constant 0 : index
    %c1 = arith.constant 1 : index
    %c0_7 = arith.constant 0 : index
    %c0_8 = arith.constant 0 : index
    %9 = vector.load %arg2[%c0_6, %c1, %c0_7, %c0_8] : memref<1x4x8x128xf32, #tpu.memory_space<vmem>>, vector<1x1x8x128xf32>
    %10 = vector.shape_cast %9 : vector<1x1x8x128xf32> to vector<8x128xf32>
    %11 = vector.shape_cast %8 : vector<8x128xf32> to vector<1x1x8x128xf32>
    tpu.vector_store %arg2[%c0_6, %c1, %c0_7, %c0_8], %11 {strides = array<i32>} : memref<1x4x8x128xf32, #tpu.memory_space<vmem>>, vector<1x1x8x128xf32>,
    %12 = arith.mulf %0, %0 : vector<16x128xf32>
    %13 = vector.shape_cast %12 : vector<16x128xf32> to vector<2x8x128xf32>
    %cst_9 = arith.constant dense<0.000000e+00> : vector<8x128xf32>
    %14 = vector.multi_reduction <add>, %13, %cst_9 [0] : vector<2x8x128xf32> to vector<8x128xf32>
    %c0_10 = arith.constant 0 : index
    %c2 = arith.constant 2 : index
    %c0_11 = arith.constant 0 : index
    %c0_12 = arith.constant 0 : index
    %15 = vector.load %arg2[%c0_10, %c2, %c0_11, %c0_12] : memref<1x4x8x128xf32, #tpu.memory_space<vmem>>, vector<1x1x8x128xf32>
    %16 = vector.shape_cast %15 : vector<1x1x8x128xf32> to vector<8x128xf32>
    %17 = vector.shape_cast %14 : vector<8x128xf32> to vector<1x1x8x128xf32>
    tpu.vector_store %arg2[%c0_10, %c2, %c0_11, %c0_12], %17 {strides = array<i32>} : memref<1x4x8x128xf32, #tpu.memory_space<vmem>>, vector<1x1x8x128xf32>,
    %18 = vector.shape_cast %1 : vector<16x128xf32> to vector<2x8x128xf32>
    %cst_13 = arith.constant dense<0xFF800000> : vector<8x128xf32>
    %19 = vector.multi_reduction <maximumf>, %18, %cst_13 [0] : vector<2x8x128xf32> to vector<8x128xf32>
    %c0_14 = arith.constant 0 : index
    %c3 = arith.constant 3 : index
    %c0_15 = arith.constant 0 : index
    %c0_16 = arith.constant 0 : index
    %20 = vector.load %arg2[%c0_14, %c3, %c0_15, %c0_16] : memref<1x4x8x128xf32, #tpu.memory_space<vmem>>, vector<1x1x8x128xf32>
    %21 = vector.shape_cast %20 : vector<1x1x8x128xf32> to vector<8x128xf32>
    %22 = vector.shape_cast %19 : vector<8x128xf32> to vector<1x1x8x128xf32>
    tpu.vector_store %arg2[%c0_14, %c3, %c0_15, %c0_16], %22 {strides = array<i32>} : memref<1x4x8x128xf32, #tpu.memory_space<vmem>>, vector<1x1x8x128xf32>,
    return
  }
  func.func @transform_0(%arg0: i32) -> (i32, i32) {
    %c0_i32 = arith.constant 0 : i32
    %c0_i32_0 = arith.constant 0 : i32
    return %arg0, %c0_i32 : i32, i32
  }
  func.func @transform_1(%arg0: i32) -> (i32, i32, i32, i32) {
    %c0_i32 = arith.constant 0 : i32
    %c0_i32_0 = arith.constant 0 : i32
    %c0_i32_1 = arith.constant 0 : i32
    %c0_i32_2 = arith.constant 0 : i32
    return %arg0, %c0_i32, %c0_i32_0, %c0_i32_1 : i32, i32, i32, i32
  }
}

</mosaic_0001>

<llo_original>
// kernel: tpu_custom_call.1
$region0: #{tpu_custom_call.1}
  #allocation0 [shape = 'u32[]', space=smem, size = 0x4, offset = 0x4, fixed_abs, tag = 'smem constant byte address 0x4 - core index']
  #allocation1 [shape = 'u32[144,128]{1,0:T(1,128)}', space=vmem, size = 0x12000, scoped, tag = 'internal scratch']
  %s0 = inlined_call_operand.hbm [shape: f32[16,128], index: 0, kind: input, shape index: {}]
  %s1 = inlined_call_operand.hbm [shape: f32[1,4,8,128], index: 1, kind: output, shape index: {}]
  %s2 = sld [smem:[#allocation0]]
  $region18: #{tpu_custom_call.1} parent=0
    _
  %s4 = ssub.s32 1, %s2
  %s5 = scalar_select 0, %s4, %s2
  $region1: #{tpu_custom_call.1} parent=0
    #allocation2 [shape = 'u8[8192]{0}', space=vmem, size = 0x2000, scoped, tag = 'input window, operand 0, single buffered']
    #allocation3 [shape = 's32[1]{0}', space=sflag, size = 0x4, scoped, tag = 'scoped memory for tpu_custom_call.1']
    #allocation4 [shape = 's32[1]{0}', space=sflag, size = 0x4, scoped, tag = 'scoped memory for tpu_custom_call.1']
    #allocation5 [shape = 'u8[16384]{0}', space=vmem, size = 0x4000, scoped, tag = 'output window, operand 0, single buffered']
    %6 = vsyncpa [#allocation3], 0
    %7 = vsyncpa [#allocation4], 0
    // Predicated region
    $region2: #{tpu_custom_call.1} parent=1 // pred_check
      _
    $region3: #{tpu_custom_call.1} parent=1 // pred_check_branch
      %9 = sbr.rel (0) target = $region5
    $region4: #{tpu_custom_call.1} parent=1 // pred_region
      %s11 = ssub.s32 256, 256
      %12 = vsyncadd [#allocation3], %s11
      %s13 = sshll.u32 [#allocation2], 4
      %s14 = int_to_ptr.vmem [resolvable:$true] %s13
      %19 = dma.hbm_to_vmem [thread:$0]  %s0, 256, %s14, [#allocation3], 128, 128, 8
    $region5: #{tpu_custom_call.1} parent=1 // pred_fallthru
      _
    // Predicated region
    $region6: #{tpu_custom_call.1} parent=1 // pred_check
      _
    $region7: #{tpu_custom_call.1} parent=1 // pred_check_branch
      %21 = sbr.rel (0) target = $region9
    $region8: #{tpu_custom_call.1} parent=1 // pred_region
      %22 = dma.done [#allocation3], 256
    $region9: #{tpu_custom_call.1} parent=1 // pred_fallthru
      _
    %v23 = vld [vmem:[#allocation2] sm:$0xff]
    %v24 = vld [vmem:[#allocation2 + $0x8] sm:$0xff]
    %v25 = vand.u32 2147483647, %v23
    %v26 = vand.u32 2147483647, %v24
    %v27 = vadd.f32 %v25, %v26
    %28 = vst [vmem:[#allocation5] sm:$0xff] %v27
    %v29 = vadd.f32 %v23, %v24
    %s30 = scalar_lea.vmem [#allocation5], 8
    %31 = vst [vmem:[%s30] sm:$0xff] %v29
    %v32 = vmul.f32 %v23, %v23
    %v33 = vmul.f32 %v24, %v24
    %v34 = vadd.f32 %v32, %v33
    %s35 = scalar_lea.vmem [#allocation5], 16
    %36 = vst [vmem:[%s35] sm:$0xff] %v34
    %v37 = vmax.f32 %v25, %v26
    %s38 = scalar_lea.vmem [#allocation5], 24
    %39 = vst [vmem:[%s38] sm:$0xff] %v37
    // Predicated region
    $region10: #{tpu_custom_call.1} parent=1 // pred_check
      _
    $region11: #{tpu_custom_call.1} parent=1 // pred_check_branch
      %41 = sbr.rel (0) target = $region13
    $region12: #{tpu_custom_call.1} parent=1 // pred_region
      %s43 = ssub.s32 512, 512
      %44 = vsyncadd [#allocation4], %s43
      %s45 = sshll.u32 [#allocation5], 4
      %s46 = int_to_ptr.vmem [resolvable:$true] %s45
      %51 = dma.vmem_to_hbm [thread:$0]  %s46, 512, %s1, [#allocation4], 128, 128, 8
    $region13: #{tpu_custom_call.1} parent=1 // pred_fallthru
      _
    // Predicated region
    $region14: #{tpu_custom_call.1} parent=1 // pred_check
      _
    $region15: #{tpu_custom_call.1} parent=1 // pred_check_branch
      %53 = sbr.rel (0) target = $region17
    $region16: #{tpu_custom_call.1} parent=1 // pred_region
      %54 = dma.done [#allocation4], 512
    $region17: #{tpu_custom_call.1} parent=1 // pred_fallthru
      _
    %55 = vsyncpa [#allocation3], 1
    %56 = vsyncpa [#allocation4], 1

</llo_original>
